<compile_context>
chip_gen: v7x
topology: tpu7x:2x2x1
jax: 0.10.0
libtpu: 0.0.40
codegen_flags: <defaults>
</compile_context>

<pallas_src>
import jax
import jax.numpy as jnp
from jax.experimental import pallas as pl
from jax.experimental.pallas import tpu as pltpu


def _round_up(v: int, m: int) -> int:
    return (v + m - 1) // m * m


def _pick_tk(d_pad: int, max_tk: int = 2048) -> int:
    """Largest multiple of 128 that divides d_pad (itself a 128-multiple) and <= max_tk."""
    m = d_pad // 128
    best = 1
    for cand in range(1, max_tk // 128 + 1):
        if m % cand == 0:
            best = cand
    return best * 128


def _dce_kernel(x_ref, c_ref, xsq_ref, csq_ref, o_ref, acc_ref):
    """Grid = (B tiles, C tiles, D tiles); D (reduction) is the last axis."""
    k = pl.program_id(2)

    @pl.when(k == 0)
    def _init():
        acc_ref[...] = jnp.zeros_like(acc_ref)

    # bf16 MXU matmul with f32 accumulation.
    acc_ref[...] += jnp.dot(x_ref[...], c_ref[...],
                            preferred_element_type=jnp.float32)

    @pl.when(k == pl.num_programs(2) - 1)
    def _finalize():
        # -dist = 2*x@c - ||x||^2 - ||c||^2, fused into one epilogue pass.
        o_ref[...] = (2.0 * acc_ref[...]
                      - xsq_ref[...]
                      - csq_ref[...]).astype(o_ref.dtype)


@jax.jit
def dce_loss_forward(x, centers):
    """Returns (centers, -dist) exactly like the PyTorch module's forward."""
    B, D = x.shape
    D2, C = centers.shape
    assert D == D2, "feature dim mismatch"

    # ---- hoisted ||x||^2 (exact f32, computed on the un-cast input) --------
    xf = x.astype(jnp.float32)
    xsq = jnp.sum(xf * xf, axis=1, keepdims=True)                 # [B, 1]

    # ---- class axis: pad to a 128 multiple (tiny parameter) -> lane-dense --
    C_pad = _round_up(C, 128)
    TN = min(512, C_pad)

    # ---- reduction axis: single full-D tile when possible (no x copy) ------
    if D <= 2048:
        TK, D_pad = D, D
        x_in, c_in = x, centers
    else:
        D_pad = _round_up(D, 128)
        TK = _pick_tk(D_pad)
        x_in = jnp.pad(x, ((0, 0), (0, D_pad - D)))
        c_in = jnp.pad(centers, ((0, D_pad - D), (0, 0)))

    cf = jnp.pad(c_in.astype(jnp.float32), ((0, 0), (0, C_pad - C)))
    csq = jnp.sum(cf * cf, axis=0, keepdims=True)                 # [1, C_pad]

    # bf16 operands for the MXU (native rate on v5e / v6e / v7x).
    x_bf = x_in.astype(jnp.bfloat16)
    c_bf = cf.astype(jnp.bfloat16)

    # ---- batch tiling: bf16 needs TM % 16 == 0; split >=2 ways for v7x -----
    TM = min(256, _round_up(B, 16))
    if pl.cdiv(B, TM) < 2 and B >= 32:
        TM = _round_up((B + 1) // 2, 16)

    grid = (pl.cdiv(B, TM), pl.cdiv(C_pad, TN), D_pad // TK)

    neg_dist_p = pl.pallas_call(
        _dce_kernel,
        out_shape=jax.ShapeDtypeStruct((B, C_pad), jnp.float32),
        grid_spec=pltpu.PrefetchScalarGridSpec(
            num_scalar_prefetch=0,
            grid=grid,
            in_specs=[
                pl.BlockSpec((TM, TK), lambda i, j, k: (i, k)),    # x (bf16)
                pl.BlockSpec((TK, TN), lambda i, j, k: (k, j)),    # centers (bf16)
                pl.BlockSpec((TM, 1), lambda i, j, k: (i, 0)),     # ||x||^2
                pl.BlockSpec((1, TN), lambda i, j, k: (0, j)),     # ||c||^2
            ],
            out_specs=pl.BlockSpec((TM, TN), lambda i, j, k: (i, j)),
            scratch_shapes=[pltpu.VMEM((TM, TN), jnp.float32)],    # f32 acc
        ),
        compiler_params=pltpu.CompilerParams(
            dimension_semantics=("parallel", "parallel", "arbitrary"),
        ),
    )(x_bf, c_bf, xsq, csq)

    neg_dist = neg_dist_p if C_pad == C else neg_dist_p[:, :C]
    return centers, neg_dist


def _reference_f32(x, centers):
    fs = jnp.sum(jnp.square(x.astype(jnp.float32)), axis=1, keepdims=True)
    cs = jnp.sum(jnp.square(centers.astype(jnp.float32)), axis=0, keepdims=True)
    fic = 2.0 * jnp.dot(x.astype(jnp.float32), centers.astype(jnp.float32),
                        preferred_element_type=jnp.float32)
    return -(fs + cs - fic)


def _reference_bf16(x, centers):
    fs = jnp.sum(jnp.square(x.astype(jnp.float32)), axis=1, keepdims=True)
    cs = jnp.sum(jnp.square(centers.astype(jnp.float32)), axis=0, keepdims=True)
    fic = 2.0 * jnp.dot(x.astype(jnp.bfloat16), centers.astype(jnp.bfloat16),
                        preferred_element_type=jnp.float32)
    return -(fs + cs - fic)


if __name__ == "__main__":
    key = jax.random.PRNGKey(0)

    # ---- small shapes matching the module's intended use -------------------
    n_classes = 4
    feat_dim = 32
    batch = 8

    kx, kc, kx2, kc2 = jax.random.split(key, 4)
    x = jax.random.normal(kx, (batch, feat_dim), dtype=jnp.float32)

    # Deterministic centers init, mirroring nn.init.kaiming_normal_
    # (fan_in mode on a [feat_dim, n_classes] tensor -> fan_in = n_classes,
    #  gain = sqrt(2) for the default leaky_relu nonlinearity).
    std = (2.0 / n_classes) ** 0.5
    centers = std * jax.random.normal(kc, (feat_dim, n_classes), dtype=jnp.float32)

    centers_out, neg_dist = dce_loss_forward(x, centers)
    jax.block_until_ready(neg_dist)

    assert centers_out.shape == (feat_dim, n_classes)
    assert neg_dist.shape == (batch, n_classes)
    assert jnp.allclose(neg_dist, _reference_bf16(x, centers), atol=5e-2, rtol=1e-2), \
        "small-shape mismatch (bf16 reference)"
    assert jnp.allclose(neg_dist, _reference_f32(x, centers), atol=5e-1, rtol=2e-2), \
        "small-shape mismatch (f32 reference)"

    # ---- larger shape exercising multi-tile batch grid + class padding -----
    B2, D2v, C2 = 384, 300, 130
    x2 = jax.random.normal(kx2, (B2, D2v), dtype=jnp.float32)
    c2 = (2.0 / C2) ** 0.5 * jax.random.normal(kc2, (D2v, C2), dtype=jnp.float32)

    _, neg_dist2 = dce_loss_forward(x2, c2)
    jax.block_until_ready(neg_dist2)

    assert neg_dist2.shape == (B2, C2)
    assert jnp.allclose(neg_dist2, _reference_bf16(x2, c2), atol=5e-2, rtol=1e-2), \
        "tiled-shape mismatch (bf16 reference)"
    assert jnp.allclose(neg_dist2, _reference_f32(x2, c2), atol=1.0, rtol=2e-2), \
        "tiled-shape mismatch (f32 reference)"

    print("KERNEL_OK")
</pallas_src>

<mosaic_0001>
module attributes {stable_mosaic.version = 11 : i64} {
  func.func @_dce_kernel(%arg0: i32, %arg1: i32, %arg2: i32, %arg3: memref<16x32xbf16, #tpu.memory_space<vmem>>, %arg4: memref<32x128xbf16, #tpu.memory_space<vmem>>, %arg5: memref<16x1xf32, #tpu.memory_space<vmem>>, %arg6: memref<1x128xf32, #tpu.memory_space<vmem>>, %arg7: memref<16x128xf32, #tpu.memory_space<vmem>>, %arg8: memref<16x128xf32, #tpu.memory_space<vmem>>) attributes {dimension_semantics = [#tpu.dimension_semantics<parallel>, #tpu.dimension_semantics<parallel>, #tpu.dimension_semantics<arbitrary>], iteration_bounds = array<i64: 1, 1, 1>, scalar_prefetch = 0 : i64, scratch_operands = 1 : i64, tpu.core_type = #tpu.core_type<tc>, window_params = [{transform_indices = @transform_0, window_bounds = array<i64: 16, 32>}, {transform_indices = @transform_1, window_bounds = array<i64: 32, 128>}, {transform_indices = @transform_2, window_bounds = array<i64: 16, 1>}, {transform_indices = @transform_3, window_bounds = array<i64: 1, 128>}, {transform_indices = @transform_4, window_bounds = array<i64: 16, 128>}]} {
    %c0_i32 = arith.constant 0 : i32
    %0 = arith.cmpi eq, %arg2, %c0_i32 : i32
    %1 = arith.extui %0 : i1 to i32
    %c0_i32_0 = arith.constant 0 : i32
    %2 = arith.cmpi ne, %1, %c0_i32_0 : i32
    scf.if %2 {
      %cst_10 = arith.constant 0.000000e+00 : f32
      %12 = vector.broadcast %cst_10 : f32 to vector<16x128xf32>
      %c0_11 = arith.constant 0 : index
      %c0_12 = arith.constant 0 : index
      %13 = vector.load %arg8[%c0_11, %c0_12] : memref<16x128xf32, #tpu.memory_space<vmem>>, vector<16x128xf32>
      tpu.vector_store %arg8[%c0_11, %c0_12], %12 {strides = array<i32>} : memref<16x128xf32, #tpu.memory_space<vmem>>, vector<16x128xf32>,
    } else {
    }
    %c0 = arith.constant 0 : index
    %c0_1 = arith.constant 0 : index
    %3 = vector.load %arg8[%c0, %c0_1] : memref<16x128xf32, #tpu.memory_space<vmem>>, vector<16x128xf32>
    %c0_2 = arith.constant 0 : index
    %c0_3 = arith.constant 0 : index
    %4 = vector.load %arg3[%c0_2, %c0_3] : memref<16x32xbf16, #tpu.memory_space<vmem>>, vector<16x32xbf16>
    %c0_4 = arith.constant 0 : index
    %c0_5 = arith.constant 0 : index
    %5 = vector.load %arg4[%c0_4, %c0_5] : memref<32x128xbf16, #tpu.memory_space<vmem>>, vector<32x128xbf16>
    %cst = arith.constant dense<0.000000e+00> : vector<16x128xf32>
    %6 = tpu.matmul %4, %5, %cst {dimension_numbers = #tpu.dot_dimension_numbers<[1], [0], [0], [1], [0, 0, 1, 1], [], []>} : vector<16x32xbf16>, vector<32x128xbf16>, vector<16x128xf32> -> vector<16x128xf32>
    %7 = arith.addf %3, %6 : vector<16x128xf32>
    %c0_6 = arith.constant 0 : index
    %c0_7 = arith.constant 0 : index
    %8 = vector.load %arg8[%c0_6, %c0_7] : memref<16x128xf32, #tpu.memory_space<vmem>>, vector<16x128xf32>
    tpu.vector_store %arg8[%c0_6, %c0_7], %7 {strides = array<i32>} : memref<16x128xf32, #tpu.memory_space<vmem>>, vector<16x128xf32>,
    %c0_i32_8 = arith.constant 0 : i32
    %9 = arith.cmpi eq, %arg2, %c0_i32_8 : i32
    %10 = arith.extui %9 : i1 to i32
    %c0_i32_9 = arith.constant 0 : i32
    %11 = arith.cmpi ne, %10, %c0_i32_9 : i32
    scf.if %11 {
      %c0_10 = arith.constant 0 : index
      %c0_11 = arith.constant 0 : index
      %12 = vector.load %arg8[%c0_10, %c0_11] : memref<16x128xf32, #tpu.memory_space<vmem>>, vector<16x128xf32>
      %cst_12 = arith.constant 2.000000e+00 : f32
      %13 = vector.broadcast %cst_12 : f32 to vector<16x128xf32>
      %14 = arith.mulf %13, %12 : vector<16x128xf32>
      %c0_13 = arith.constant 0 : index
      %c0_14 = arith.constant 0 : index
      %15 = vector.load %arg5[%c0_13, %c0_14] : memref<16x1xf32, #tpu.memory_space<vmem>>, vector<16x1xf32>
      %16 = vector.broadcast %15 : vector<16x1xf32> to vector<16x128xf32>
      %17 = arith.subf %14, %16 : vector<16x128xf32>
      %c0_15 = arith.constant 0 : index
      %c0_16 = arith.constant 0 : index
      %18 = vector.load %arg6[%c0_15, %c0_16] : memref<1x128xf32, #tpu.memory_space<vmem>>, vector<1x128xf32>
      %19 = vector.broadcast %18 : vector<1x128xf32> to vector<16x128xf32>
      %20 = arith.subf %17, %19 : vector<16x128xf32>
      %c0_17 = arith.constant 0 : index
      %c0_18 = arith.constant 0 : index
      %21 = vector.load %arg7[%c0_17, %c0_18] : memref<16x128xf32, #tpu.memory_space<vmem>>, vector<16x128xf32>
      tpu.vector_store %arg7[%c0_17, %c0_18], %20 {strides = array<i32>} : memref<16x128xf32, #tpu.memory_space<vmem>>, vector<16x128xf32>,
    } else {
    }
    return
  }
  func.func @transform_0(%arg0: i32, %arg1: i32, %arg2: i32) -> (i32, i32) {
    %c0_i32 = arith.constant 0 : i32
    return %arg0, %arg2 : i32, i32
  }
  func.func @transform_1(%arg0: i32, %arg1: i32, %arg2: i32) -> (i32, i32) {
    %c0_i32 = arith.constant 0 : i32
    return %arg2, %arg1 : i32, i32
  }
  func.func @transform_2(%arg0: i32, %arg1: i32, %arg2: i32) -> (i32, i32) {
    %c0_i32 = arith.constant 0 : i32
    %c0_i32_0 = arith.constant 0 : i32
    return %arg0, %c0_i32 : i32, i32
  }
  func.func @transform_3(%arg0: i32, %arg1: i32, %arg2: i32) -> (i32, i32) {
    %c0_i32 = arith.constant 0 : i32
    %c0_i32_0 = arith.constant 0 : i32
    return %c0_i32, %arg1 : i32, i32
  }
  func.func @transform_4(%arg0: i32, %arg1: i32, %arg2: i32) -> (i32, i32) {
    %c0_i32 = arith.constant 0 : i32
    return %arg0, %arg1 : i32, i32
  }
}

</mosaic_0001>

<llo_original>
// kernel: dce_loss_forward.1
$region0: #{dce_loss_forward.1}
  #allocation0 [shape = 'u32[]', space=smem, size = 0x4, offset = 0x4, fixed_abs, tag = 'smem constant byte address 0x4 - core index']
  #allocation1 [shape = 'u32[144,128]{1,0:T(1,128)}', space=vmem, size = 0x12000, scoped, tag = 'internal scratch']
  #allocation2 [shape = 'f32[16,128]{1,0:T(8,128)}', space=vmem, size = 0x2000, scoped, tag = 'scratch operand']
  %s0 = inlined_call_operand.vmem [shape: bf16[8,32], index: 0, kind: input, shape index: {}]
  %s1 = inlined_call_operand.vmem [shape: bf16[32,128], index: 1, kind: input, shape index: {}]
  %s2 = inlined_call_operand.vmem [shape: f32[8,1], index: 2, kind: input, shape index: {}]
  %s3 = inlined_call_operand.vmem [shape: f32[1,128], index: 3, kind: input, shape index: {}]
  %s4 = inlined_call_operand.vmem [shape: f32[8,128], index: 4, kind: output, shape index: {}]
  %s5 = sld [smem:[#allocation0]]
  $region68: #{dce_loss_forward.1} parent=0
    _
  %s7 = ssub.s32 1, %s5
  %s8 = scalar_select 0, %s7, %s5
  $region1: #{dce_loss_forward.1} parent=0
    #allocation3 [shape = 'u8[8192]{0}', space=vmem, size = 0x2000, scoped, tag = 'output window, operand 0, single buffered']
    // Predicated region
    $region2: #{dce_loss_forward.1} parent=1 // pred_check
      _
    $region3: #{dce_loss_forward.1} parent=1 // pred_check_branch
      %10 = sbr.rel (0) target = $region5
    $region4: #{dce_loss_forward.1} parent=1 // pred_region
      _
    $region5: #{dce_loss_forward.1} parent=1 // pred_fallthru
      _
    // Predicated region
    $region6: #{dce_loss_forward.1} parent=1 // pred_check
      _
    $region7: #{dce_loss_forward.1} parent=1 // pred_check_branch
      %12 = sbr.rel (0) target = $region9
    $region8: #{dce_loss_forward.1} parent=1 // pred_region
      _
    $region9: #{dce_loss_forward.1} parent=1 // pred_fallthru
      _
    // Predicated region
    $region10: #{dce_loss_forward.1} parent=1 // pred_check
      _
    $region11: #{dce_loss_forward.1} parent=1 // pred_check_branch
      %14 = sbr.rel (0) target = $region13
    $region12: #{dce_loss_forward.1} parent=1 // pred_region
      _
    $region13: #{dce_loss_forward.1} parent=1 // pred_fallthru
      _
    // Predicated region
    $region14: #{dce_loss_forward.1} parent=1 // pred_check
      _
    $region15: #{dce_loss_forward.1} parent=1 // pred_check_branch
      %16 = sbr.rel (0) target = $region17
    $region16: #{dce_loss_forward.1} parent=1 // pred_region
      _
    $region17: #{dce_loss_forward.1} parent=1 // pred_fallthru
      _
    %p18 = scmp.eq.s32.totalorder 0, 0
    // Predicated region
    $region18: #{dce_loss_forward.1} parent=1 // pred_check
      %p19 = pneg %p18
    $region19: #{dce_loss_forward.1} parent=1 // pred_check_branch
      %21 = sbr.rel (%p19) target = $region21
    $region20: #{dce_loss_forward.1} parent=1 // pred_region
      %22 = vst [vmem:[#allocation2] sm:$0xff] 0.0
      %23 = vst [vmem:[#allocation2 + $0x8] sm:$0xff] 0.0
    $region21: #{dce_loss_forward.1} parent=1 // pred_fallthru
      _
    %v24 = vld [vmem:[#allocation2] sm:$0xff]
    %v25 = vld [vmem:[#allocation2 + $0x8] sm:$0xff]
    %v26 = vld [vmem:[%s0] sm:$0xf]
    %v27 = vld [vmem:[%s0 + $0x4] sm:$0xf]
    %v28 = vld [vmem:[%s1] sm:$0xf]
    %v29 = vld [vmem:[%s1 + $0x4] sm:$0xf]
    %v30 = vld [vmem:[%s1 + $0x8] sm:$0xf]
    %v31 = vld [vmem:[%s1 + $0xc] sm:$0xf]
    %v34 = vunpack.c.l.b16 %v26
    %v35 = vunpack.c.l.b16 %v27
    %v36 = vpack.c.b16 %v35, %v34
    %v41 = vunpack.c.l.b16 %v28
    %v42 = vunpack.c.l.b16 %v29
    %v43 = vunpack.c.l.b16 %v30
    %v44 = vunpack.c.l.b16 %v31
    %v45 = vpack.c.b16 %v42, %v41
    %v46 = vpack.c.b16 %v44, %v43
    %vm49 = vcmask 261120
    %v51 = vsel %vm49, %v36, 0
    %53 = vmatprep.subr.bf16.mxu0 0
    %54 = vmatpush1.bf16.msra.mxu0 %v45
    %55 = vmatprep.subr.bf16.mxu0 0
    %56 = vmatpush1.bf16.msra.mxu0 %v46
    %57 = vmatprep.subr.bf16.mxu0 0
    %58 = vmatpush1.bf16.msra.mxu0 0
    %59 = vmatprep.subr.bf16.mxu0 0
    %60 = vmatpush1.bf16.msra.mxu0 0
    %61 = vmatprep.subr.bf16.mxu0 0
    %62 = vmatpush1.bf16.msra.mxu0 0
    %63 = vmatprep.subr.bf16.mxu0 0
    %64 = vmatpush1.bf16.msra.mxu0 0
    %65 = vmatprep.subr.bf16.mxu0 0
    %66 = vmatpush1.bf16.msra.mxu0 0
    %67 = vmatprep.subr.bf16.mxu0 0
    %68 = vmatpush1.bf16.msra.mxu0 0
    %69 = vmatprep.subr.bf16.mxu0 0
    %70 = vmatpush1.bf16.msra.mxu0 0
    %71 = vmatprep.subr.bf16.mxu0 0
    %72 = vmatpush1.bf16.msra.mxu0 0
    %73 = vmatprep.subr.bf16.mxu0 0
    %74 = vmatpush1.bf16.msra.mxu0 0
    %75 = vmatprep.subr.bf16.mxu0 0
    %76 = vmatpush1.bf16.msra.mxu0 0
    %77 = vmatprep.subr.bf16.mxu0 0
    %78 = vmatpush1.bf16.msra.mxu0 0
    %79 = vmatprep.subr.bf16.mxu0 0
    %80 = vmatpush1.bf16.msra.mxu0 0
    %81 = vmatprep.subr.bf16.mxu0 0
    %82 = vmatpush1.bf16.msra.mxu0 0
    %83 = vmatprep.subr.bf16.mxu0 0
    %84 = vmatpush1.bf16.msra.mxu0 0
    %85 = vmatprep.mubr.bf16.mxu0 0
    %86 = vmatmul.mubr.bf16.gmra.mrb[0].mxu0 %v51
    %v87 = vpop.f32.mrb[0].mxu0
    %v88 = vadd.f32 0.0, %v87
    %v89 = vpop.f32.mrb[0].mxu0
    %v90 = vpop.f32.mrb[0].mxu0
    %v91 = vadd.f32 0.0, %v90
    %v92 = vpop.f32.mrb[0].mxu0
    %93 = vdwg.mxu0
    %v94 = vadd.f32 %v24, %v88
    %v95 = vadd.f32 %v25, %v91
    %96 = vst [vmem:[#allocation2] sm:$0xff] %v94
    %97 = vst [vmem:[#allocation2 + $0x8] sm:$0xff] %v95
    // Predicated region
    $region22: #{dce_loss_forward.1} parent=1 // pred_check
      %p98 = pneg %p18
    $region23: #{dce_loss_forward.1} parent=1 // pred_check_branch
      %100 = sbr.rel (%p98) target = $region25
    $region24: #{dce_loss_forward.1} parent=1 // pred_region
      %v101 = vld [vmem:[#allocation2] sm:$0xff]
      %v102 = vld [vmem:[#allocation2 + $0x8] sm:$0xff]
      %v103 = vmul.f32 %v101, 2.0
      %v104 = vmul.f32 %v102, 2.0
      %v105 = vld [vmem:[%s2] sm:$0xff]
      %v106 = vld [vmem:[%s2 + $0x8] sm:$0xff]
      %108 = vset.pattern.permute.xlu0 0
      %109 = vperm.xlu0 %108, %v105
      %v110 = vpop.permute.xlu0 %109
      %113 = vset.pattern.permute.xlu0 0
      %114 = vperm.xlu0 %113, %v106
      %v115 = vpop.permute.xlu0 %114
      %v117 = vsub.f32 %v103, %v110
      %v118 = vsub.f32 %v104, %v115
      %v119 = vld [vmem:[%s3] sm:$0x1]
      %v121 = vlaneseq
      %v122 = vshrl.u32 %v121, 7
      %v123 = vsub.s32 0, %v122
      %v124 = vrot.slane %v119, %v123
      %v126 = vsub.f32 %v117, %v124
      %v127 = vsub.f32 %v118, %v124
      %128 = vst [vmem:[#allocation3] sm:$0xff] %v126
      %129 = vst [vmem:[#allocation3 + $0x8] sm:$0xff] %v127
    $region25: #{dce_loss_forward.1} parent=1 // pred_fallthru
      _
    // Predicated region
    $region26: #{dce_loss_forward.1} parent=1 // pred_check
      _
    $region27: #{dce_loss_forward.1} parent=1 // pred_check_branch
      %131 = sbr.rel (0) target = $region29
    $region28: #{dce_loss_forward.1} parent=1 // pred_region
      // Predicated region
      $region30: #{dce_loss_forward.1} parent=28 // pred_check
        _
      $region31: #{dce_loss_forward.1} parent=28 // pred_check_branch
        %133 = sbr.rel (0) target = $region33
      $region32: #{dce_loss_forward.1} parent=28 // pred_region
        // Predicated region
        $region34: #{dce_loss_forward.1} parent=32 // pred_check
          _
        $region35: #{dce_loss_forward.1} parent=32 // pred_check_branch
          %135 = sbr.rel (0) target = $region37
        $region36: #{dce_loss_forward.1} parent=32 // pred_region
          // Predicated region
          $region49: #{dce_loss_forward.1} parent=36 // pred_check
            _
          $region50: #{dce_loss_forward.1} parent=36 // pred_check_branch
            %150 = sbr.rel (0) target = $region52
          $region51: #{dce_loss_forward.1} parent=36 // pred_region
            loop: start=0, step=1, limit=1
            $region53: #{dce_loss_forward.1} parent=51 // loop_pre_header
              _
            $region54: #{dce_loss_forward.1} parent=51 // loop_header
              %s152 = sphi 0, %s156
              %p153 = scmp.ge.s32.totalorder %s152, 1
              %s157 = sphi [#allocation3], [#allocation3]
              %s158 = sphi %s4, %s4
            $region55: #{dce_loss_forward.1} parent=51 // loop_header_branch
              %155 = sbr.rel (%p153) target = $region59
            $region56: #{dce_loss_forward.1} parent=51 // loop_body
              %v159 = vld [vmem:[%s157] sm:$0xff]
              %160 = vst [vmem:[%s158] sm:$0xff] %v159
            $region57: #{dce_loss_forward.1} parent=51 // loop_footer
              %s156 = sadd.s32 1, %s152
            $region58: #{dce_loss_forward.1} parent=51 // loop_footer_branch
              %151 = sbr.rel target = $region54
            $region59: #{dce_loss_forward.1} parent=51 // loop_exit
              _
          $region52: #{dce_loss_forward.1} parent=36 // pred_fallthru
            _
          // Predicated region
          $region60: #{dce_loss_forward.1} parent=36 // pred_check
            _
          $region61: #{dce_loss_forward.1} parent=36 // pred_check_branch
            %162 = sbr.rel target = $region63
          $region62: #{dce_loss_forward.1} parent=36 // pred_region
            _
          $region63: #{dce_loss_forward.1} parent=36 // pred_fallthru
            _
        $region37: #{dce_loss_forward.1} parent=32 // pred_fallthru
          _
        // Predicated region
        $region38: #{dce_loss_forward.1} parent=32 // pred_check
          _
        $region39: #{dce_loss_forward.1} parent=32 // pred_check_branch
          %137 = sbr.rel target = $region41
        $region40: #{dce_loss_forward.1} parent=32 // pred_region
          loop: start=0, step=1, limit=1
          $region42: #{dce_loss_forward.1} parent=40 // loop_pre_header
            _
          $region43: #{dce_loss_forward.1} parent=40 // loop_header
            %s140 = sphi 0, %s144
            %p141 = scmp.ge.s32.totalorder %s140, 1
            %s145 = sphi [#allocation3], [#allocation3]
            %s146 = sphi %s4, %s4
          $region44: #{dce_loss_forward.1} parent=40 // loop_header_branch
            %143 = sbr.rel (%p141) target = $region48
          $region45: #{dce_loss_forward.1} parent=40 // loop_body
            %v147 = vld [vmem:[%s145] sm:$0xff]
            %148 = vst [vmem:[%s146] sm:$0xff] %v147
          $region46: #{dce_loss_forward.1} parent=40 // loop_footer
            %s144 = sadd.s32 1, %s140
          $region47: #{dce_loss_forward.1} parent=40 // loop_footer_branch
            %139 = sbr.rel target = $region43
          $region48: #{dce_loss_forward.1} parent=40 // loop_exit
            _
        $region41: #{dce_loss_forward.1} parent=32 // pred_fallthru
          _
      $region33: #{dce_loss_forward.1} parent=28 // pred_fallthru
        _
      %163 = vnop
    $region29: #{dce_loss_forward.1} parent=1 // pred_fallthru
      _
    // Predicated region
    $region64: #{dce_loss_forward.1} parent=1 // pred_check
      _
    $region65: #{dce_loss_forward.1} parent=1 // pred_check_branch
      %165 = sbr.rel (0) target = $region67
    $region66: #{dce_loss_forward.1} parent=1 // pred_region
      _
    $region67: #{dce_loss_forward.1} parent=1 // pred_fallthru
      _

</llo_original>
